<compile_context>
chip_gen: v6e
topology: v6e:2x2x1
jax: 0.10.0
libtpu: 0.0.40
codegen_flags: <defaults>
</compile_context>

<pallas_src>
import functools

import jax
import jax.numpy as jnp
from jax.experimental import pallas as pl
from jax.experimental.pallas import tpu as pltpu

# Logical (PyTorch) feature dims.
D_IN, D_H1, D_H2, D_OUT = 300, 150, 75, 10
# Lane-aligned padded dims for hidden/output features (multiples of 128).
P_H1, P_H2, P_OUT = 256, 128, 128


def _mlp_softmax_kernel(x_ref, w1_ref, b1_ref, w2_ref, b2_ref, w3_ref, b3_ref, o_ref):
    # x_ref: (bm, 300) f32; w*: bf16 (lane-padded outputs, K=300 on layer 1); b*: (1, P_*) f32.
    x = x_ref[...].astype(jnp.bfloat16)  # f32->bf16 cast is free VPU filler under the DMA

    # layer 1: Linear(300 -> 150) + ReLU   (Dropout == identity in eval)
    h1 = jnp.dot(x, w1_ref[...], preferred_element_type=jnp.float32) + b1_ref[...]
    h1 = jnp.maximum(h1, 0.0)

    # layer 2: Linear(150 -> 75) + ReLU
    h2 = jnp.dot(h1.astype(w2_ref.dtype), w2_ref[...],
                 preferred_element_type=jnp.float32) + b2_ref[...]
    h2 = jnp.maximum(h2, 0.0)

    # layer 3: Linear(75 -> 10)
    logits = jnp.dot(h2.astype(w3_ref.dtype), w3_ref[...],
                     preferred_element_type=jnp.float32) + b3_ref[...]

    # Mask the 118 padded logit lanes so they contribute exactly 0 to the softmax denominator.
    lane = jax.lax.broadcasted_iota(jnp.int32, logits.shape, dimension=1)
    logits = jnp.where(lane < D_OUT, logits, jnp.float32(-1e30))

    # Numerically stable softmax over the feature axis; exact f32 divide; lane-dense store.
    m = jnp.max(logits, axis=1, keepdims=True)
    e = jnp.exp(logits - m)
    denom = jnp.sum(e, axis=1, keepdims=True)
    o_ref[...] = (e / denom).astype(o_ref.dtype)


def prepare_params(params, mxu_dtype=jnp.bfloat16):
    """One-time transform: zero-pad weight/bias output dims to 128 lanes; weights in bf16.
    W1 keeps K=300 rows so it lines up with the unpadded input block."""
    w1, b1, w2, b2, w3, b3 = params

    def pad2(a, rows, cols):
        return jnp.pad(a, ((0, rows - a.shape[0]), (0, cols - a.shape[1])))

    return (
        pad2(w1, D_IN, P_H1).astype(mxu_dtype), pad2(b1, 1, P_H1).astype(jnp.float32),
        pad2(w2, P_H1, P_H2).astype(mxu_dtype), pad2(b2, 1, P_H2).astype(jnp.float32),
        pad2(w3, P_H2, P_OUT).astype(mxu_dtype), pad2(b3, 1, P_OUT).astype(jnp.float32),
    )


def _round_up(n, m):
    return ((n + m - 1) // m) * m


@functools.partial(jax.jit, static_argnames=("block_rows",))
def linear_net_forward(x, padded_params, block_rows=2048):
    """x: (B, C, H, W) float32 with C*H*W == 300. Returns (B, 10) softmax probs (f32)."""
    B = x.shape[0]
    x2d = x.reshape(B, -1)  # == torch x.view(x.shape[0], -1)
    assert x2d.shape[1] == D_IN

    # Row block: multiple of 16, split into >= 2 blocks once B exceeds one block (v7x megacore),
    # capped at block_rows so large batches amortize the ~0.35us per-grid-step overhead.
    bm = min(block_rows, max(16, _round_up(pl.cdiv(B, 2), 16)))
    n_blocks = pl.cdiv(B, bm)
    b_pad = n_blocks * bm
    if b_pad != B:
        # Row-only zero pad (no lane pad, no dtype cast) so tail rows are well-defined.
        x2d = jnp.pad(x2d, ((0, b_pad - B), (0, 0)))

    w1, b1, w2, b2, w3, b3 = padded_params
    # Weights/biases: constant block index -> VMEM-resident across all grid steps.
    resident = lambda a: pl.BlockSpec(a.shape, lambda i: (0, 0))

    out = pl.pallas_call(
        _mlp_softmax_kernel,
        out_shape=jax.ShapeDtypeStruct((b_pad, P_OUT), jnp.float32),
        grid=(n_blocks,),
        in_specs=[
            pl.BlockSpec((bm, D_IN), lambda i: (i, 0)),  # last dim == full array dim -> legal
            resident(w1), resident(b1),
            resident(w2), resident(b2),
            resident(w3), resident(b3),
        ],
        out_specs=pl.BlockSpec((bm, P_OUT), lambda i: (i, 0)),
        compiler_params=pltpu.CompilerParams(
            dimension_semantics=("parallel",),
            vmem_limit_bytes=48 * 1024 * 1024,
        ),
    )(x2d, w1, b1, w2, b2, w3, b3)

    return out[:B, :D_OUT]


def init_params(key):
    """Deterministic init matching torch nn.Linear default: U(-1/sqrt(fan_in), 1/sqrt(fan_in)).
    Weights stored as (in_features, out_features) = transpose of torch's nn.Linear weight."""
    dims = [(D_IN, D_H1), (D_H1, D_H2), (D_H2, D_OUT)]
    params = []
    for i, (fan_in, fan_out) in enumerate(dims):
        kw, kb = jax.random.split(jax.random.fold_in(key, i))
        bound = 1.0 / jnp.sqrt(float(fan_in))
        w = jax.random.uniform(kw, (fan_in, fan_out), jnp.float32, -bound, bound)
        b = jax.random.uniform(kb, (1, fan_out), jnp.float32, -bound, bound)
        params.extend([w, b])
    return tuple(params)


def _reference_forward(x, padded_params):
    """Pure-JAX reference using the same padded bf16 weights (eval-mode dropout)."""
    B = x.shape[0]
    xb = x.reshape(B, -1).astype(jnp.bfloat16)
    w1, b1, w2, b2, w3, b3 = padded_params
    h1 = jnp.maximum(jnp.dot(xb, w1, preferred_element_type=jnp.float32) + b1, 0.0)
    h2 = jnp.maximum(
        jnp.dot(h1.astype(jnp.bfloat16), w2, preferred_element_type=jnp.float32) + b2, 0.0)
    logits = jnp.dot(h2.astype(jnp.bfloat16), w3, preferred_element_type=jnp.float32) + b3
    return jax.nn.softmax(logits[:, :D_OUT], axis=1)


if __name__ == "__main__":
    key = jax.random.PRNGKey(0)
    k_x, k_p = jax.random.split(key)
    # Small input consistent with the flatten-to-300 forward: (B=8, C=3, H=10, W=10)
    x = jax.random.normal(k_x, (8, 3, 10, 10), dtype=jnp.float32)
    params = init_params(k_p)
    padded_params = prepare_params(params)

    out = jax.block_until_ready(linear_net_forward(x, padded_params))

    # sanity: shape, finite, softmax rows sum to 1, matches pure-JAX reference
    assert out.shape == (8, 10)
    assert bool(jnp.all(jnp.isfinite(out)))
    row_sums = jnp.sum(out, axis=1)
    assert bool(jnp.allclose(row_sums, 1.0, atol=1e-3))
    ref = _reference_forward(x, padded_params)
    assert bool(jnp.allclose(out, ref, atol=2e-3))
    print("KERNEL_OK")
</pallas_src>

<mosaic_0001>
module attributes {stable_mosaic.version = 11 : i64} {
  func.func @_mlp_softmax_kernel(%arg0: i32, %arg1: memref<16x300xf32, #tpu.memory_space<vmem>>, %arg2: memref<300x256xbf16, #tpu.memory_space<vmem>>, %arg3: memref<1x256xf32, #tpu.memory_space<vmem>>, %arg4: memref<256x128xbf16, #tpu.memory_space<vmem>>, %arg5: memref<1x128xf32, #tpu.memory_space<vmem>>, %arg6: memref<128x128xbf16, #tpu.memory_space<vmem>>, %arg7: memref<1x128xf32, #tpu.memory_space<vmem>>, %arg8: memref<16x128xf32, #tpu.memory_space<vmem>>) attributes {dimension_semantics = [#tpu.dimension_semantics<parallel>], iteration_bounds = array<i64: 1>, scalar_prefetch = 0 : i64, scratch_operands = 0 : i64, tpu.core_type = #tpu.core_type<tc>, window_params = [{transform_indices = @transform_0, window_bounds = array<i64: 16, 300>}, {pipeline_mode = #tpu.pipeline_mode<synchronous>, transform_indices = @transform_1, window_bounds = array<i64: 300, 256>}, {pipeline_mode = #tpu.pipeline_mode<synchronous>, transform_indices = @transform_2, window_bounds = array<i64: 1, 256>}, {pipeline_mode = #tpu.pipeline_mode<synchronous>, transform_indices = @transform_3, window_bounds = array<i64: 256, 128>}, {pipeline_mode = #tpu.pipeline_mode<synchronous>, transform_indices = @transform_4, window_bounds = array<i64: 1, 128>}, {pipeline_mode = #tpu.pipeline_mode<synchronous>, transform_indices = @transform_5, window_bounds = array<i64: 128, 128>}, {pipeline_mode = #tpu.pipeline_mode<synchronous>, transform_indices = @transform_6, window_bounds = array<i64: 1, 128>}, {transform_indices = @transform_7, window_bounds = array<i64: 16, 128>}]} {
    %c0 = arith.constant 0 : index
    %c0_0 = arith.constant 0 : index
    %0 = vector.load %arg1[%c0, %c0_0] : memref<16x300xf32, #tpu.memory_space<vmem>>, vector<16x300xf32>
    %1 = arith.truncf %0 : vector<16x300xf32> to vector<16x300xbf16>
    %c0_1 = arith.constant 0 : index
    %c0_2 = arith.constant 0 : index
    %2 = vector.load %arg2[%c0_1, %c0_2] : memref<300x256xbf16, #tpu.memory_space<vmem>>, vector<300x256xbf16>
    %cst = arith.constant dense<0.000000e+00> : vector<16x256xf32>
    %3 = tpu.matmul %1, %2, %cst {dimension_numbers = #tpu.dot_dimension_numbers<[1], [0], [0], [1], [0, 0, 1, 1], [], []>} : vector<16x300xbf16>, vector<300x256xbf16>, vector<16x256xf32> -> vector<16x256xf32>
    %c0_3 = arith.constant 0 : index
    %c0_4 = arith.constant 0 : index
    %4 = vector.load %arg3[%c0_3, %c0_4] : memref<1x256xf32, #tpu.memory_space<vmem>>, vector<1x256xf32>
    %5 = vector.broadcast %4 : vector<1x256xf32> to vector<16x256xf32>
    %6 = arith.addf %3, %5 : vector<16x256xf32>
    %cst_5 = arith.constant 0.000000e+00 : f32
    %7 = vector.broadcast %cst_5 : f32 to vector<16x256xf32>
    %8 = arith.maximumf %6, %7 : vector<16x256xf32>
    %9 = arith.truncf %8 : vector<16x256xf32> to vector<16x256xbf16>
    %c0_6 = arith.constant 0 : index
    %c0_7 = arith.constant 0 : index
    %10 = vector.load %arg4[%c0_6, %c0_7] : memref<256x128xbf16, #tpu.memory_space<vmem>>, vector<256x128xbf16>
    %cst_8 = arith.constant dense<0.000000e+00> : vector<16x128xf32>
    %11 = tpu.matmul %9, %10, %cst_8 {dimension_numbers = #tpu.dot_dimension_numbers<[1], [0], [0], [1], [0, 0, 1, 1], [], []>} : vector<16x256xbf16>, vector<256x128xbf16>, vector<16x128xf32> -> vector<16x128xf32>
    %c0_9 = arith.constant 0 : index
    %c0_10 = arith.constant 0 : index
    %12 = vector.load %arg5[%c0_9, %c0_10] : memref<1x128xf32, #tpu.memory_space<vmem>>, vector<1x128xf32>
    %13 = vector.broadcast %12 : vector<1x128xf32> to vector<16x128xf32>
    %14 = arith.addf %11, %13 : vector<16x128xf32>
    %cst_11 = arith.constant 0.000000e+00 : f32
    %15 = vector.broadcast %cst_11 : f32 to vector<16x128xf32>
    %16 = arith.maximumf %14, %15 : vector<16x128xf32>
    %17 = arith.truncf %16 : vector<16x128xf32> to vector<16x128xbf16>
    %c0_12 = arith.constant 0 : index
    %c0_13 = arith.constant 0 : index
    %18 = vector.load %arg6[%c0_12, %c0_13] : memref<128x128xbf16, #tpu.memory_space<vmem>>, vector<128x128xbf16>
    %cst_14 = arith.constant dense<0.000000e+00> : vector<16x128xf32>
    %19 = tpu.matmul %17, %18, %cst_14 {dimension_numbers = #tpu.dot_dimension_numbers<[1], [0], [0], [1], [0, 0, 1, 1], [], []>} : vector<16x128xbf16>, vector<128x128xbf16>, vector<16x128xf32> -> vector<16x128xf32>
    %c0_15 = arith.constant 0 : index
    %c0_16 = arith.constant 0 : index
    %20 = vector.load %arg7[%c0_15, %c0_16] : memref<1x128xf32, #tpu.memory_space<vmem>>, vector<1x128xf32>
    %21 = vector.broadcast %20 : vector<1x128xf32> to vector<16x128xf32>
    %22 = arith.addf %19, %21 : vector<16x128xf32>
    %23 = tpu.iota {dimensions = array<i32: 1>} : vector<16x128xi32>
    %c10_i32 = arith.constant 10 : i32
    %24 = vector.broadcast %c10_i32 : i32 to vector<16x128xi32>
    %25 = arith.cmpi slt, %23, %24 : vector<16x128xi32>
    %cst_17 = arith.constant -1.000000e+30 : f32
    %26 = vector.broadcast %cst_17 : f32 to vector<16x128xf32>
    %27 = arith.select %25, %22, %26 : vector<16x128xi1>, vector<16x128xf32>
    %cst_18 = arith.constant dense<0xFF800000> : vector<16xf32>
    %28 = vector.multi_reduction <maximumf>, %27, %cst_18 [1] : vector<16x128xf32> to vector<16xf32>
    %29 = vector.shape_cast %28 : vector<16xf32> to vector<16x1xf32>
    %30 = vector.broadcast %29 : vector<16x1xf32> to vector<16x128xf32>
    %31 = arith.subf %27, %30 : vector<16x128xf32>
    %32 = math.exp %31 : vector<16x128xf32>
    %cst_19 = arith.constant dense<0.000000e+00> : vector<16xf32>
    %33 = vector.multi_reduction <add>, %32, %cst_19 [1] : vector<16x128xf32> to vector<16xf32>
    %34 = vector.shape_cast %33 : vector<16xf32> to vector<16x1xf32>
    %35 = vector.broadcast %34 : vector<16x1xf32> to vector<16x128xf32>
    %36 = arith.divf %32, %35 : vector<16x128xf32>
    %c0_20 = arith.constant 0 : index
    %c0_21 = arith.constant 0 : index
    %37 = vector.load %arg8[%c0_20, %c0_21] : memref<16x128xf32, #tpu.memory_space<vmem>>, vector<16x128xf32>
    tpu.vector_store %arg8[%c0_20, %c0_21], %36 {strides = array<i32>} : memref<16x128xf32, #tpu.memory_space<vmem>>, vector<16x128xf32>,
    return
  }
  func.func @transform_0(%arg0: i32) -> (i32, i32) {
    %c0_i32 = arith.constant 0 : i32
    %c0_i32_0 = arith.constant 0 : i32
    return %arg0, %c0_i32 : i32, i32
  }
  func.func @transform_1(%arg0: i32) -> (i32, i32) {
    %c0_i32 = arith.constant 0 : i32
    %c0_i32_0 = arith.constant 0 : i32
    %c0_i32_1 = arith.constant 0 : i32
    return %c0_i32, %c0_i32_0 : i32, i32
  }
  func.func @transform_2(%arg0: i32) -> (i32, i32) {
    %c0_i32 = arith.constant 0 : i32
    %c0_i32_0 = arith.constant 0 : i32
    %c0_i32_1 = arith.constant 0 : i32
    return %c0_i32, %c0_i32_0 : i32, i32
  }
  func.func @transform_3(%arg0: i32) -> (i32, i32) {
    %c0_i32 = arith.constant 0 : i32
    %c0_i32_0 = arith.constant 0 : i32
    %c0_i32_1 = arith.constant 0 : i32
    return %c0_i32, %c0_i32_0 : i32, i32
  }
  func.func @transform_4(%arg0: i32) -> (i32, i32) {
    %c0_i32 = arith.constant 0 : i32
    %c0_i32_0 = arith.constant 0 : i32
    %c0_i32_1 = arith.constant 0 : i32
    return %c0_i32, %c0_i32_0 : i32, i32
  }
  func.func @transform_5(%arg0: i32) -> (i32, i32) {
    %c0_i32 = arith.constant 0 : i32
    %c0_i32_0 = arith.constant 0 : i32
    %c0_i32_1 = arith.constant 0 : i32
    return %c0_i32, %c0_i32_0 : i32, i32
  }
  func.func @transform_6(%arg0: i32) -> (i32, i32) {
    %c0_i32 = arith.constant 0 : i32
    %c0_i32_0 = arith.constant 0 : i32
    %c0_i32_1 = arith.constant 0 : i32
    return %c0_i32, %c0_i32_0 : i32, i32
  }
  func.func @transform_7(%arg0: i32) -> (i32, i32) {
    %c0_i32 = arith.constant 0 : i32
    %c0_i32_0 = arith.constant 0 : i32
    return %arg0, %c0_i32 : i32, i32
  }
}

</mosaic_0001>

<llo_original>
// kernel: linear_net_forward.1
$region0: #{linear_net_forward.1}
  #allocation0 [shape = 'u32[]', space=smem, size = 0x4, offset = 0x4, fixed_abs, tag = 'smem constant byte address 0x4 - core index']
  #allocation1 [shape = 'u32[144,128]{1,0:T(1,128)}', space=vmem, size = 0x12000, scoped, tag = 'internal scratch']
  %s0 = inlined_call_operand.vmem [shape: f32[16,300], index: 0, kind: input, shape index: {}]
  %s1 = inlined_call_operand.vmem [shape: bf16[300,256], index: 1, kind: input, shape index: {}]
  %s2 = inlined_call_operand.vmem [shape: f32[1,256], index: 2, kind: input, shape index: {}]
  %s3 = inlined_call_operand.vmem [shape: bf16[256,128], index: 3, kind: input, shape index: {}]
  %s4 = inlined_call_operand.vmem [shape: f32[1,128], index: 4, kind: input, shape index: {}]
  %s5 = inlined_call_operand.vmem [shape: bf16[128,128], index: 5, kind: input, shape index: {}]
  %s6 = inlined_call_operand.vmem [shape: f32[1,128], index: 6, kind: input, shape index: {}]
  %s7 = inlined_call_operand.vmem [shape: f32[16,128], index: 7, kind: output, shape index: {}]
  %s8 = sld [smem:[#allocation0]]
  $region38: #{linear_net_forward.1} parent=0
    _
  %s10 = ssub.s32 1, %s8
  %s11 = scalar_select 0, %s10, %s8
  // Predicated region
  $region2: #{linear_net_forward.1} parent=0 // pred_check
    _
  $region3: #{linear_net_forward.1} parent=0 // pred_check_branch
    %13 = sbr.rel (0) target = $region5
  $region4: #{linear_net_forward.1} parent=0 // pred_region
    _
  $region5: #{linear_net_forward.1} parent=0 // pred_fallthru
    _
  // Predicated region
  $region6: #{linear_net_forward.1} parent=0 // pred_check
    _
  $region7: #{linear_net_forward.1} parent=0 // pred_check_branch
    %15 = sbr.rel (0) target = $region9
  $region8: #{linear_net_forward.1} parent=0 // pred_region
    _
  $region9: #{linear_net_forward.1} parent=0 // pred_fallthru
    _
  // Predicated region
  $region10: #{linear_net_forward.1} parent=0 // pred_check
    _
  $region11: #{linear_net_forward.1} parent=0 // pred_check_branch
    %17 = sbr.rel (0) target = $region13
  $region12: #{linear_net_forward.1} parent=0 // pred_region
    _
  $region13: #{linear_net_forward.1} parent=0 // pred_fallthru
    _
  // Predicated region
  $region14: #{linear_net_forward.1} parent=0 // pred_check
    _
  $region15: #{linear_net_forward.1} parent=0 // pred_check_branch
    %19 = sbr.rel (0) target = $region17
  $region16: #{linear_net_forward.1} parent=0 // pred_region
    _
  $region17: #{linear_net_forward.1} parent=0 // pred_fallthru
    _
  // Predicated region
  $region18: #{linear_net_forward.1} parent=0 // pred_check
    _
  $region19: #{linear_net_forward.1} parent=0 // pred_check_branch
    %21 = sbr.rel (0) target = $region21
  $region20: #{linear_net_forward.1} parent=0 // pred_region
    _
  $region21: #{linear_net_forward.1} parent=0 // pred_fallthru
    _
  // Predicated region
  $region22: #{linear_net_forward.1} parent=0 // pred_check
    _
  $region23: #{linear_net_forward.1} parent=0 // pred_check_branch
    %23 = sbr.rel (0) target = $region25
  $region24: #{linear_net_forward.1} parent=0 // pred_region
    _
  $region25: #{linear_net_forward.1} parent=0 // pred_fallthru
    _
  // Predicated region
  $region26: #{linear_net_forward.1} parent=0 // pred_check
    _
  $region27: #{linear_net_forward.1} parent=0 // pred_check_branch
    %25 = sbr.rel (0) target = $region29
  $region28: #{linear_net_forward.1} parent=0 // pred_region
    _
  $region29: #{linear_net_forward.1} parent=0 // pred_fallthru
    _
  %v27 = vld [vmem:[%s0] sm:$0xff]
  %v28 = vld [vmem:[%s0 + $0x8] sm:$0xff]
  %v29 = vld [vmem:[%s0 + $0x10] sm:$0xff]
  %v30 = vld [vmem:[%s0 + $0x18] sm:$0xff]
  %v31 = vld [vmem:[%s0 + $0x20] sm:$0xff]
  %v32 = vld [vmem:[%s0 + $0x28] sm:$0xff]
  %v33 = vpack.c.bf16 %v30, %v27
  %v34 = vpack.c.bf16 %v31, %v28
  %v35 = vpack.c.bf16 %v32, %v29
  %v36 = vld [vmem:[%s1] sm:$0xff]
  %v37 = vld [vmem:[%s1 + $0x8] sm:$0xff]
  %v38 = vld [vmem:[%s1 + $0x10] sm:$0xff]
  %v39 = vld [vmem:[%s1 + $0x18] sm:$0xff]
  %v40 = vld [vmem:[%s1 + $0x20] sm:$0xff]
  %v41 = vld [vmem:[%s1 + $0x28] sm:$0xff]
  %v42 = vld [vmem:[%s1 + $0x30] sm:$0xff]
  %v43 = vld [vmem:[%s1 + $0x38] sm:$0xff]
  %v44 = vld [vmem:[%s1 + $0x40] sm:$0xff]
  %v45 = vld [vmem:[%s1 + $0x48] sm:$0xff]
  %v46 = vld [vmem:[%s1 + $0x50] sm:$0xff]
  %v47 = vld [vmem:[%s1 + $0x58] sm:$0xff]
  %v48 = vld [vmem:[%s1 + $0x60] sm:$0xff]
  %v49 = vld [vmem:[%s1 + $0x68] sm:$0xff]
  %v50 = vld [vmem:[%s1 + $0x70] sm:$0xff]
  %v51 = vld [vmem:[%s1 + $0x78] sm:$0xff]
  %v52 = vld [vmem:[%s1 + $0x80] sm:$0xff]
  %v53 = vld [vmem:[%s1 + $0x88] sm:$0xff]
  %v54 = vld [vmem:[%s1 + $0x90] sm:$0xff]
  %v55 = vld [vmem:[%s1 + $0x98] sm:$0xff]
  %v56 = vld [vmem:[%s1 + $0xa0] sm:$0xff]
  %v57 = vld [vmem:[%s1 + $0xa8] sm:$0xff]
  %v58 = vld [vmem:[%s1 + $0xb0] sm:$0xff]
  %v59 = vld [vmem:[%s1 + $0xb8] sm:$0xff]
  %v60 = vld [vmem:[%s1 + $0xc0] sm:$0xff]
  %v61 = vld [vmem:[%s1 + $0xc8] sm:$0xff]
  %v62 = vld [vmem:[%s1 + $0xd0] sm:$0xff]
  %v63 = vld [vmem:[%s1 + $0xd8] sm:$0xff]
  %v64 = vld [vmem:[%s1 + $0xe0] sm:$0xff]
  %v65 = vld [vmem:[%s1 + $0xe8] sm:$0xff]
  %v66 = vld [vmem:[%s1 + $0xf0] sm:$0xff]
  %v67 = vld [vmem:[%s1 + $0xf8] sm:$0xff]
  %v68 = vld [vmem:[%s1 + $0x100] sm:$0xff]
  %v69 = vld [vmem:[%s1 + $0x108] sm:$0xff]
  %v70 = vld [vmem:[%s1 + $0x110] sm:$0xff]
  %v71 = vld [vmem:[%s1 + $0x118] sm:$0xff]
  %v72 = vld [vmem:[%s1 + $0x120] sm:$0xff]
  %v73 = vld [vmem:[%s1 + $0x128] sm:$0x33]
  %v74 = vld [vmem:[%s2] sm:$0x3]
  %v76 = vlaneseq
  %v77 = vshrl.u32 %v76, 7
  %v78 = vsub.s32 0, %v77
  %v79 = vrot.slane %v74, %v78
  %v80 = vlaneseq
  %v81 = vshrl.u32 %v80, 7
  %v82 = vsub.s32 1, %v81
  %v83 = vrot.slane %v74, %v82
  %v124 = vunpack.c.l.b16 %v36
  %v125 = vunpack.c.h.b16 %v36
  %v126 = vunpack.c.l.b16 %v37
  %v127 = vunpack.c.h.b16 %v37
  %v128 = vunpack.c.l.b16 %v38
  %v129 = vunpack.c.h.b16 %v38
  %v130 = vunpack.c.l.b16 %v39
  %v131 = vunpack.c.h.b16 %v39
  %v132 = vunpack.c.l.b16 %v40
  %v133 = vunpack.c.h.b16 %v40
  %v134 = vunpack.c.l.b16 %v41
  %v135 = vunpack.c.h.b16 %v41
  %v136 = vunpack.c.l.b16 %v42
  %v137 = vunpack.c.h.b16 %v42
  %v138 = vunpack.c.l.b16 %v43
  %v139 = vunpack.c.h.b16 %v43
  %v140 = vunpack.c.l.b16 %v44
  %v141 = vunpack.c.h.b16 %v44
  %v142 = vunpack.c.l.b16 %v45
  %v143 = vunpack.c.h.b16 %v45
  %v144 = vunpack.c.l.b16 %v46
  %v145 = vunpack.c.h.b16 %v46
  %v146 = vunpack.c.l.b16 %v47
  %v147 = vunpack.c.h.b16 %v47
  %v148 = vunpack.c.l.b16 %v48
  %v149 = vunpack.c.h.b16 %v48
  %v150 = vunpack.c.l.b16 %v49
  %v151 = vunpack.c.h.b16 %v49
  %v152 = vunpack.c.l.b16 %v50
  %v153 = vunpack.c.h.b16 %v50
  %v154 = vunpack.c.l.b16 %v51
  %v155 = vunpack.c.h.b16 %v51
  %v156 = vunpack.c.l.b16 %v52
  %v157 = vunpack.c.h.b16 %v52
  %v158 = vunpack.c.l.b16 %v53
  %v159 = vunpack.c.h.b16 %v53
  %v160 = vunpack.c.l.b16 %v54
  %v161 = vunpack.c.h.b16 %v54
  %v162 = vunpack.c.l.b16 %v55
  %v163 = vunpack.c.h.b16 %v55
  %v164 = vunpack.c.l.b16 %v56
  %v165 = vunpack.c.h.b16 %v56
  %v166 = vunpack.c.l.b16 %v57
  %v167 = vunpack.c.h.b16 %v57
  %v168 = vunpack.c.l.b16 %v58
  %v169 = vunpack.c.h.b16 %v58
  %v170 = vunpack.c.l.b16 %v59
  %v171 = vunpack.c.h.b16 %v59
  %v172 = vunpack.c.l.b16 %v60
  %v173 = vunpack.c.h.b16 %v60
  %v174 = vunpack.c.l.b16 %v61
  %v175 = vunpack.c.h.b16 %v61
  %v176 = vunpack.c.l.b16 %v62
  %v177 = vunpack.c.h.b16 %v62
  %v178 = vunpack.c.l.b16 %v63
  %v179 = vunpack.c.h.b16 %v63
  %v180 = vunpack.c.l.b16 %v64
  %v181 = vunpack.c.h.b16 %v64
  %v182 = vunpack.c.l.b16 %v65
  %v183 = vunpack.c.h.b16 %v65
  %v184 = vunpack.c.l.b16 %v66
  %v185 = vunpack.c.h.b16 %v66
  %v186 = vunpack.c.l.b16 %v67
  %v187 = vunpack.c.h.b16 %v67
  %v188 = vunpack.c.l.b16 %v68
  %v189 = vunpack.c.h.b16 %v68
  %v190 = vunpack.c.l.b16 %v69
  %v191 = vunpack.c.h.b16 %v69
  %v192 = vunpack.c.l.b16 %v70
  %v193 = vunpack.c.h.b16 %v70
  %v194 = vunpack.c.l.b16 %v71
  %v195 = vunpack.c.h.b16 %v71
  %v196 = vunpack.c.l.b16 %v72
  %v197 = vunpack.c.h.b16 %v72
  %v198 = vunpack.c.l.b16 %v73
  %v199 = vunpack.c.h.b16 %v73
  %v200 = vpack.c.b16 %v126, %v124
  %v201 = vpack.c.b16 %v127, %v125
  %v202 = vpack.c.b16 %v130, %v128
  %v203 = vpack.c.b16 %v131, %v129
  %v204 = vpack.c.b16 %v134, %v132
  %v205 = vpack.c.b16 %v135, %v133
  %v206 = vpack.c.b16 %v138, %v136
  %v207 = vpack.c.b16 %v139, %v137
  %v208 = vpack.c.b16 %v142, %v140
  %v209 = vpack.c.b16 %v143, %v141
  %v210 = vpack.c.b16 %v146, %v144
  %v211 = vpack.c.b16 %v147, %v145
  %v212 = vpack.c.b16 %v150, %v148
  %v213 = vpack.c.b16 %v151, %v149
  %v214 = vpack.c.b16 %v154, %v152
  %v215 = vpack.c.b16 %v155, %v153
  %v216 = vpack.c.b16 %v158, %v156
  %v217 = vpack.c.b16 %v159, %v157
  %v218 = vpack.c.b16 %v162, %v160
  %v219 = vpack.c.b16 %v163, %v161
  %v220 = vpack.c.b16 %v166, %v164
  %v221 = vpack.c.b16 %v167, %v165
  %v222 = vpack.c.b16 %v170, %v168
  %v223 = vpack.c.b16 %v171, %v169
  %v224 = vpack.c.b16 %v174, %v172
  %v225 = vpack.c.b16 %v175, %v173
  %v226 = vpack.c.b16 %v178, %v176
  %v227 = vpack.c.b16 %v179, %v177
  %v228 = vpack.c.b16 %v182, %v180
  %v229 = vpack.c.b16 %v183, %v181
  %v230 = vpack.c.b16 %v186, %v184
  %v231 = vpack.c.b16 %v187, %v185
  %v232 = vpack.c.b16 %v190, %v188
  %v233 = vpack.c.b16 %v191, %v189
  %v234 = vpack.c.b16 %v194, %v192
  %v235 = vpack.c.b16 %v195, %v193
  %v236 = vpack.c.b16 %v198, %v196
  %v237 = vpack.c.b16 %v199, %v197
  %vm274 = vcmask 359424
  %v276 = vsel %vm274, %v35, 0
  %vm278 = vcmask 1045504
  %v280 = vsel %vm278, %v236, 0
  %v283 = vsel %vm278, %v237, 0
  %285 = vmatprep.subr.bf16.mxu0 %v215
  %286 = vmatpush1.bf16.msra.mxu0 %v214
  %287 = vmatprep.subr.bf16.mxu0 %v213
  %288 = vmatpush1.bf16.msra.mxu0 %v212
  %289 = vmatprep.subr.bf16.mxu0 %v211
  %290 = vmatpush1.bf16.msra.mxu0 %v210
  %291 = vmatprep.subr.bf16.mxu0 %v209
  %292 = vmatpush1.bf16.msra.mxu0 %v208
  %293 = vmatprep.subr.bf16.mxu0 %v207
  %294 = vmatpush1.bf16.msra.mxu0 %v206
  %295 = vmatprep.subr.bf16.mxu0 %v205
  %296 = vmatpush1.bf16.msra.mxu0 %v204
  %297 = vmatprep.subr.bf16.mxu0 %v203
  %298 = vmatpush1.bf16.msra.mxu0 %v202
  %299 = vmatprep.subr.bf16.mxu0 %v201
  %300 = vmatpush1.bf16.msra.mxu0 %v200
  %301 = vmatprep.subr.bf16.mxu0 %v231
  %302 = vmatpush2.bf16.msra.mxu0 %v230
  %303 = vmatprep.subr.bf16.mxu0 %v229
  %304 = vmatpush2.bf16.msra.mxu0 %v228
  %305 = vmatprep.subr.bf16.mxu0 %v227
  %306 = vmatpush2.bf16.msra.mxu0 %v226
  %307 = vmatprep.subr.bf16.mxu0 %v225
  %308 = vmatpush2.bf16.msra.mxu0 %v224
  %309 = vmatprep.subr.bf16.mxu0 %v223
  %310 = vmatpush2.bf16.msra.mxu0 %v222
  %311 = vmatprep.subr.bf16.mxu0 %v221
  %312 = vmatpush2.bf16.msra.mxu0 %v220
  %313 = vmatprep.subr.bf16.mxu0 %v219
  %314 = vmatpush2.bf16.msra.mxu0 %v218
  %315 = vmatprep.subr.bf16.mxu0 %v217
  %316 = vmatpush2.bf16.msra.mxu0 %v216
  %317 = vmatprep.mubr.bf16.mxu0 %v34
  %318 = vmatmul.mubr.bf16.gmra.mxu0 %v33
  %v319 = vpop.f32.mrf.mxu0
  %v320 = vadd.f32 %v79, %v319
  %v321 = vpop.f32.mrf.mxu0
  %v322 = vadd.f32 %v83, %v321
  %v323 = vpop.f32.mrf.mxu0
  %v324 = vadd.f32 %v79, %v323
  %v325 = vpop.f32.mrf.mxu0
  %v326 = vadd.f32 %v83, %v325
  %327 = vdwg.mxu0
  %328 = vmatprep.subr.bf16.mxu0 0
  %329 = vmatpush1.bf16.msra.mxu0 0
  %330 = vmatprep.subr.bf16.mxu0 0
  %331 = vmatpush1.bf16.msra.mxu0 0
  %332 = vmatprep.subr.bf16.mxu0 0
  %333 = vmatpush1.bf16.msra.mxu0 0
  %334 = vmatprep.subr.bf16.mxu0 0
  %335 = vmatpush1.bf16.msra.mxu0 0
  %336 = vmatprep.subr.bf16.mxu0 0
  %337 = vmatpush1.bf16.msra.mxu0 0
  %338 = vmatprep.subr.bf16.mxu0 %v283
  %339 = vmatpush1.bf16.msra.mxu0 %v280
  %340 = vmatprep.subr.bf16.mxu0 %v235
  %341 = vmatpush1.bf16.msra.mxu0 %v234
  %342 = vmatprep.subr.bf16.mxu0 %v233
  %343 = vmatpush1.bf16.msra.mxu0 %v232
  %344 = vmatprep.subr.bf16.mxu0 0
  %345 = vmatpush2.bf16.msra.mxu0 0
  %346 = vmatprep.subr.bf16.mxu0 0
  %347 = vmatpush2.bf16.msra.mxu0 0
  %348 = vmatprep.subr.bf16.mxu0 0
  %349 = vmatpush2.bf16.msra.mxu0 0
  %350 = vmatprep.subr.bf16.mxu0 0
  %351 = vmatpush2.bf16.msra.mxu0 0
  %352 = vmatprep.subr.bf16.mxu0 0
  %353 = vmatpush2.bf16.msra.mxu0 0
  %354 = vmatprep.subr.bf16.mxu0 0
  %355 = vmatpush2.bf16.msra.mxu0 0
  %356 = vmatprep.subr.bf16.mxu0 0
  %357 = vmatpush2.bf16.msra.mxu0 0
  %358 = vmatprep.subr.bf16.mxu0 0
  %359 = vmatpush2.bf16.msra.mxu0 0
  %360 = vmatprep.mubr.bf16.mxu0 0
  %361 = vmatmul.mubr.bf16.gmra.mxu0 %v276
  %v362 = vpop.f32.mrf.mxu0
  %v363 = vadd.f32 %v320, %v362
  %v364 = vpop.f32.mrf.mxu0
  %v365 = vadd.f32 %v322, %v364
  %v366 = vpop.f32.mrf.mxu0
  %v367 = vadd.f32 %v324, %v366
  %v368 = vpop.f32.mrf.mxu0
  %v369 = vadd.f32 %v326, %v368
  %370 = vdwg.mxu0
  %v371 = vmax.f32 %v363, 0.0
  %v372 = vmax.f32 %v365, 0.0
  %v373 = vmax.f32 %v367, 0.0
  %v374 = vmax.f32 %v369, 0.0
  %v375 = vpack.c.bf16 %v373, %v371
  %v376 = vpack.c.bf16 %v374, %v372
  %v377 = vld [vmem:[%s3] sm:$0xf]
  %v378 = vld [vmem:[%s3 + $0x4] sm:$0xf]
  %v379 = vld [vmem:[%s3 + $0x8] sm:$0xf]
  %v380 = vld [vmem:[%s3 + $0xc] sm:$0xf]
  %v381 = vld [vmem:[%s3 + $0x10] sm:$0xf]
  %v382 = vld [vmem:[%s3 + $0x14] sm:$0xf]
  %v383 = vld [vmem:[%s3 + $0x18] sm:$0xf]
  %v384 = vld [vmem:[%s3 + $0x1c] sm:$0xf]
  %v385 = vld [vmem:[%s3 + $0x20] sm:$0xf]
  %v386 = vld [vmem:[%s3 + $0x24] sm:$0xf]
  %v387 = vld [vmem:[%s3 + $0x28] sm:$0xf]
  %v388 = vld [vmem:[%s3 + $0x2c] sm:$0xf]
  %v389 = vld [vmem:[%s3 + $0x30] sm:$0xf]
  %v390 = vld [vmem:[%s3 + $0x34] sm:$0xf]
  %v391 = vld [vmem:[%s3 + $0x38] sm:$0xf]
  %v392 = vld [vmem:[%s3 + $0x3c] sm:$0xf]
  %v393 = vld [vmem:[%s3 + $0x40] sm:$0xf]
  %v394 = vld [vmem:[%s3 + $0x44] sm:$0xf]
  %v395 = vld [vmem:[%s3 + $0x48] sm:$0xf]
  %v396 = vld [vmem:[%s3 + $0x4c] sm:$0xf]
  %v397 = vld [vmem:[%s3 + $0x50] sm:$0xf]
  %v398 = vld [vmem:[%s3 + $0x54] sm:$0xf]
  %v399 = vld [vmem:[%s3 + $0x58] sm:$0xf]
  %v400 = vld [vmem:[%s3 + $0x5c] sm:$0xf]
  %v401 = vld [vmem:[%s3 + $0x60] sm:$0xf]
  %v402 = vld [vmem:[%s3 + $0x64] sm:$0xf]
  %v403 = vld [vmem:[%s3 + $0x68] sm:$0xf]
  %v404 = vld [vmem:[%s3 + $0x6c] sm:$0xf]
  %v405 = vld [vmem:[%s3 + $0x70] sm:$0xf]
  %v406 = vld [vmem:[%s3 + $0x74] sm:$0xf]
  %v407 = vld [vmem:[%s3 + $0x78] sm:$0xf]
  %v408 = vld [vmem:[%s3 + $0x7c] sm:$0xf]
  %v409 = vld [vmem:[%s4] sm:$0x1]
  %v411 = vlaneseq
  %v412 = vshrl.u32 %v411, 7
  %v413 = vsub.s32 0, %v412
  %v414 = vrot.slane %v409, %v413
  %v448 = vunpack.c.l.b16 %v377
  %v449 = vunpack.c.l.b16 %v378
  %v450 = vunpack.c.l.b16 %v379
  %v451 = vunpack.c.l.b16 %v380
  %v452 = vunpack.c.l.b16 %v381
  %v453 = vunpack.c.l.b16 %v382
  %v454 = vunpack.c.l.b16 %v383
  %v455 = vunpack.c.l.b16 %v384
  %v456 = vunpack.c.l.b16 %v385
  %v457 = vunpack.c.l.b16 %v386
  %v458 = vunpack.c.l.b16 %v387
  %v459 = vunpack.c.l.b16 %v388
  %v460 = vunpack.c.l.b16 %v389
  %v461 = vunpack.c.l.b16 %v390
  %v462 = vunpack.c.l.b16 %v391
  %v463 = vunpack.c.l.b16 %v392
  %v464 = vunpack.c.l.b16 %v393
  %v465 = vunpack.c.l.b16 %v394
  %v466 = vunpack.c.l.b16 %v395
  %v467 = vunpack.c.l.b16 %v396
  %v468 = vunpack.c.l.b16 %v397
  %v469 = vunpack.c.l.b16 %v398
  %v470 = vunpack.c.l.b16 %v399
  %v471 = vunpack.c.l.b16 %v400
  %v472 = vunpack.c.l.b16 %v401
  %v473 = vunpack.c.l.b16 %v402
  %v474 = vunpack.c.l.b16 %v403
  %v475 = vunpack.c.l.b16 %v404
  %v476 = vunpack.c.l.b16 %v405
  %v477 = vunpack.c.l.b16 %v406
  %v478 = vunpack.c.l.b16 %v407
  %v479 = vunpack.c.l.b16 %v408
  %v480 = vpack.c.b16 %v449, %v448
  %v481 = vpack.c.b16 %v451, %v450
  %v482 = vpack.c.b16 %v453, %v452
  %v483 = vpack.c.b16 %v455, %v454
  %v484 = vpack.c.b16 %v457, %v456
  %v485 = vpack.c.b16 %v459, %v458
  %v486 = vpack.c.b16 %v461, %v460
  %v487 = vpack.c.b16 %v463, %v462
  %v488 = vpack.c.b16 %v465, %v464
  %v489 = vpack.c.b16 %v467, %v466
  %v490 = vpack.c.b16 %v469, %v468
  %v491 = vpack.c.b16 %v471, %v470
  %v492 = vpack.c.b16 %v473, %v472
  %v493 = vpack.c.b16 %v475, %v474
  %v494 = vpack.c.b16 %v477, %v476
  %v495 = vpack.c.b16 %v479, %v478
  %512 = vmatprep.subr.bf16.mxu0 0
  %513 = vmatpush1.bf16.msra.mxu0 %v487
  %514 = vmatprep.subr.bf16.mxu0 0
  %515 = vmatpush1.bf16.msra.mxu0 %v486
  %516 = vmatprep.subr.bf16.mxu0 0
  %517 = vmatpush1.bf16.msra.mxu0 %v485
  %518 = vmatprep.subr.bf16.mxu0 0
  %519 = vmatpush1.bf16.msra.mxu0 %v484
  %520 = vmatprep.subr.bf16.mxu0 0
  %521 = vmatpush1.bf16.msra.mxu0 %v483
  %522 = vmatprep.subr.bf16.mxu0 0
  %523 = vmatpush1.bf16.msra.mxu0 %v482
  %524 = vmatprep.subr.bf16.mxu0 0
  %525 = vmatpush1.bf16.msra.mxu0 %v481
  %526 = vmatprep.subr.bf16.mxu0 0
  %527 = vmatpush1.bf16.msra.mxu0 %v480
  %528 = vmatprep.subr.bf16.mxu0 0
  %529 = vmatpush2.bf16.msra.mxu0 %v495
  %530 = vmatprep.subr.bf16.mxu0 0
  %531 = vmatpush2.bf16.msra.mxu0 %v494
  %532 = vmatprep.subr.bf16.mxu0 0
  %533 = vmatpush2.bf16.msra.mxu0 %v493
  %534 = vmatprep.subr.bf16.mxu0 0
  %535 = vmatpush2.bf16.msra.mxu0 %v492
  %536 = vmatprep.subr.bf16.mxu0 0
  %537 = vmatpush2.bf16.msra.mxu0 %v491
  %538 = vmatprep.subr.bf16.mxu0 0
  %539 = vmatpush2.bf16.msra.mxu0 %v490
  %540 = vmatprep.subr.bf16.mxu0 0
  %541 = vmatpush2.bf16.msra.mxu0 %v489
  %542 = vmatprep.subr.bf16.mxu0 0
  %543 = vmatpush2.bf16.msra.mxu0 %v488
  %544 = vmatprep.mubr.bf16.mxu0 %v376
  %545 = vmatmul.mubr.bf16.gmra.mxu0 %v375
  %v546 = vpop.f32.mrf.mxu0
  %v547 = vadd.f32 %v414, %v546
  %v548 = vpop.f32.mrf.mxu0
  %v549 = vpop.f32.mrf.mxu0
  %v550 = vadd.f32 %v414, %v549
  %v551 = vpop.f32.mrf.mxu0
  %552 = vdwg.mxu0
  %v553 = vmax.f32 %v547, 0.0
  %v554 = vmax.f32 %v550, 0.0
  %v555 = vpack.c.bf16 %v554, %v553
  %v556 = vld [vmem:[%s5] sm:$0xf]
  %v557 = vld [vmem:[%s5 + $0x4] sm:$0xf]
  %v558 = vld [vmem:[%s5 + $0x8] sm:$0xf]
  %v559 = vld [vmem:[%s5 + $0xc] sm:$0xf]
  %v560 = vld [vmem:[%s5 + $0x10] sm:$0xf]
  %v561 = vld [vmem:[%s5 + $0x14] sm:$0xf]
  %v562 = vld [vmem:[%s5 + $0x18] sm:$0xf]
  %v563 = vld [vmem:[%s5 + $0x1c] sm:$0xf]
  %v564 = vld [vmem:[%s5 + $0x20] sm:$0xf]
  %v565 = vld [vmem:[%s5 + $0x24] sm:$0xf]
  %v566 = vld [vmem:[%s5 + $0x28] sm:$0xf]
  %v567 = vld [vmem:[%s5 + $0x2c] sm:$0xf]
  %v568 = vld [vmem:[%s5 + $0x30] sm:$0xf]
  %v569 = vld [vmem:[%s5 + $0x34] sm:$0xf]
  %v570 = vld [vmem:[%s5 + $0x38] sm:$0xf]
  %v571 = vld [vmem:[%s5 + $0x3c] sm:$0xf]
  %v572 = vld [vmem:[%s6] sm:$0x1]
  %v574 = vlaneseq
  %v575 = vshrl.u32 %v574, 7
  %v576 = vsub.s32 0, %v575
  %v577 = vrot.slane %v572, %v576
  %v595 = vunpack.c.l.b16 %v556
  %v596 = vunpack.c.l.b16 %v557
  %v597 = vunpack.c.l.b16 %v558
  %v598 = vunpack.c.l.b16 %v559
  %v599 = vunpack.c.l.b16 %v560
  %v600 = vunpack.c.l.b16 %v561
  %v601 = vunpack.c.l.b16 %v562
  %v602 = vunpack.c.l.b16 %v563
  %v603 = vunpack.c.l.b16 %v564
  %v604 = vunpack.c.l.b16 %v565
  %v605 = vunpack.c.l.b16 %v566
  %v606 = vunpack.c.l.b16 %v567
  %v607 = vunpack.c.l.b16 %v568
  %v608 = vunpack.c.l.b16 %v569
  %v609 = vunpack.c.l.b16 %v570
  %v610 = vunpack.c.l.b16 %v571
  %v611 = vpack.c.b16 %v596, %v595
  %v612 = vpack.c.b16 %v598, %v597
  %v613 = vpack.c.b16 %v600, %v599
  %v614 = vpack.c.b16 %v602, %v601
  %v615 = vpack.c.b16 %v604, %v603
  %v616 = vpack.c.b16 %v606, %v605
  %v617 = vpack.c.b16 %v608, %v607
  %v618 = vpack.c.b16 %v610, %v609
  %627 = vmatprep.subr.bf16.mxu0 0
  %628 = vmatpush1.bf16.msra.mxu0 %v618
  %629 = vmatprep.subr.bf16.mxu0 0
  %630 = vmatpush1.bf16.msra.mxu0 %v617
  %631 = vmatprep.subr.bf16.mxu0 0
  %632 = vmatpush1.bf16.msra.mxu0 %v616
  %633 = vmatprep.subr.bf16.mxu0 0
  %634 = vmatpush1.bf16.msra.mxu0 %v615
  %635 = vmatprep.subr.bf16.mxu0 0
  %636 = vmatpush1.bf16.msra.mxu0 %v614
  %637 = vmatprep.subr.bf16.mxu0 0
  %638 = vmatpush1.bf16.msra.mxu0 %v613
  %639 = vmatprep.subr.bf16.mxu0 0
  %640 = vmatpush1.bf16.msra.mxu0 %v612
  %641 = vmatprep.subr.bf16.mxu0 0
  %642 = vmatpush1.bf16.msra.mxu0 %v611
  %643 = vmatprep.subr.bf16.mxu0 0
  %644 = vmatpush2.bf16.msra.mxu0 0
  %645 = vmatprep.subr.bf16.mxu0 0
  %646 = vmatpush2.bf16.msra.mxu0 0
  %647 = vmatprep.subr.bf16.mxu0 0
  %648 = vmatpush2.bf16.msra.mxu0 0
  %649 = vmatprep.subr.bf16.mxu0 0
  %650 = vmatpush2.bf16.msra.mxu0 0
  %651 = vmatprep.subr.bf16.mxu0 0
  %652 = vmatpush2.bf16.msra.mxu0 0
  %653 = vmatprep.subr.bf16.mxu0 0
  %654 = vmatpush2.bf16.msra.mxu0 0
  %655 = vmatprep.subr.bf16.mxu0 0
  %656 = vmatpush2.bf16.msra.mxu0 0
  %657 = vmatprep.subr.bf16.mxu0 0
  %658 = vmatpush2.bf16.msra.mxu0 0
  %659 = vmatprep.mubr.bf16.mxu0 0
  %660 = vmatmul.mubr.bf16.gmra.mxu0 %v555
  %v661 = vpop.f32.mrf.mxu0
  %v662 = vadd.f32 %v577, %v661
  %v663 = vpop.f32.mrf.mxu0
  %v664 = vpop.f32.mrf.mxu0
  %v665 = vadd.f32 %v577, %v664
  %v666 = vpop.f32.mrf.mxu0
  %667 = vdwg.mxu0
  %v668 = vlaneseq
  %v669 = vand.u32 %v668, 127
  %vm670 = vcmp.lt.s32.totalorder %v669, 10
  %v671 = vsel %vm670, %v662, -1e+30
  %v672 = vsel %vm670, %v665, -1e+30
  %673 = vmax.xlane.f32.xlu0 %v671
  %v674 = vpop.xlane.xlu0 %673
  %675 = vmax.xlane.f32.xlu0 %v672
  %v676 = vpop.xlane.xlu0 %675
  %v677 = vsub.f32 %v671, %v674
  %v678 = vsub.f32 %v672, %v676
  %v679 = vmul.f32 %v677, 1.442695
  %v680 = vpow.pop %v679
  %v681 = vmul.f32 %v678, 1.442695
  %v682 = vpow.pop %v681
  %683 = vadd.xlane.f32.xlu0 %v680
  %v684 = vpop.xlane.xlu0 %683
  %685 = vadd.xlane.f32.xlu0 %v682
  %v686 = vpop.xlane.xlu0 %685
  %v687 = vrcp.pop %v684
  %v688 = vmul.f32 %v680, %v687
  %v689 = vrcp.pop %v686
  %v690 = vmul.f32 %v682, %v689
  %691 = vst [vmem:[%s7] sm:$0xff] %v688
  %692 = vst [vmem:[%s7 + $0x8] sm:$0xff] %v690
  // Predicated region
  $region30: #{linear_net_forward.1} parent=0 // pred_check
    _
  $region31: #{linear_net_forward.1} parent=0 // pred_check_branch
    %694 = sbr.rel (0) target = $region33
  $region32: #{linear_net_forward.1} parent=0 // pred_region
    _
  $region33: #{linear_net_forward.1} parent=0 // pred_fallthru
    _
  // Predicated region
  $region34: #{linear_net_forward.1} parent=0 // pred_check
    _
  $region35: #{linear_net_forward.1} parent=0 // pred_check_branch
    %696 = sbr.rel (0) target = $region37
  $region36: #{linear_net_forward.1} parent=0 // pred_region
    _
  $region37: #{linear_net_forward.1} parent=0 // pred_fallthru
    _

</llo_original>
